<compile_context>
chip_gen: v7x
topology: tpu7x:2x2x1
jax: 0.10.0
libtpu: 0.0.40
codegen_flags: <defaults>
</compile_context>

<pallas_src>
import jax
import jax.numpy as jnp
from jax import lax
from jax.experimental import pallas as pl
from jax.experimental.pallas import tpu as pltpu


def _round_up(x, m):
    return ((x + m - 1) // m) * m


def _make_mingru_kernel(has_mask: bool):
    """Kernel factory: has_mask selects whether a mask ref is an input."""

    def kernel(*refs):
        if has_mask:
            (x_ref, m_ref, wf_ref, bf_ref, o_ref,
             tri_ref, a_carry, mx_carry, s_carry) = refs
        else:
            (x_ref, wf_ref, bf_ref, o_ref,
             tri_ref, a_carry, mx_carry, s_carry) = refs

        t = pl.program_id(2)

        # Reset the carried scan state (and build the lower-triangular ones
        # matrix) at the start of every (H-tile, batch) sequence.
        @pl.when(t == 0)
        def _():
            rows = lax.broadcasted_iota(jnp.int32, tri_ref.shape, 0)
            cols = lax.broadcasted_iota(jnp.int32, tri_ref.shape, 1)
            tri_ref[...] = (rows >= cols).astype(jnp.float32)
            a_carry[...] = jnp.zeros_like(a_carry)
            mx_carry[...] = jnp.full_like(mx_carry, -jnp.inf)
            s_carry[...] = jnp.zeros_like(s_carry)

        x = x_ref[...]                                  # (Tt, Din) bf16
        tt = x.shape[0]
        ht = o_ref.shape[-1]

        # Fused linear_z | linear_h : one MXU pass, bf16 operands, f32 accumulate.
        xw = jnp.dot(x, wf_ref[...], preferred_element_type=jnp.float32) + bf_ref[...]
        k = xw[:, :ht]                                   # z-gate pre-activation
        th = xw[:, ht:]                                  # tilde_h pre-activation

        # log z = k - softplus(k); log(1-z) = -softplus(k)   (one exp + one log)
        sp_k = jnp.maximum(k, 0.0) + jnp.log(1.0 + jnp.exp(-jnp.abs(k)))
        log_z = k - sp_k
        log_one_minus_z = -sp_k

        # log_g(th): fused to one exp + one log.
        #   th >= 0 : log(th + 0.5)
        #   th <  0 : -softplus(-th) = th - log(1 + exp(th))
        e_th = jnp.exp(jnp.minimum(th, 0.0))
        pos = th >= 0.0
        l_th = jnp.log(jnp.where(pos, th + 0.5, 1.0 + e_th))
        log_tilde_h = jnp.where(pos, l_th, th - l_th)

        if has_mask:
            masked = m_ref[...] > 0.5                    # (Tt, 1) bool; True == pad
            log_a = jnp.where(masked, 0.0, log_one_minus_z)
            log_b = jnp.where(masked, 0.0, log_z + log_tilde_h)
        else:
            log_a = log_one_minus_z
            log_b = log_z + log_tilde_h

        tri = tri_ref[...]                               # (Tt, Tt) lower-tri ones

        # Inclusive cumsum of log_a along time = block tri-matmul + carried prefix.
        log_a_star = jnp.dot(tri, log_a, preferred_element_type=jnp.float32) + a_carry[...]

        log_ab = log_b - log_a_star
        if has_mask:
            log_ab = jnp.where(masked, -jnp.inf, log_ab)

        # Blocked logcumsumexp: carried (running max, scaled running sum) state.
        chunk_max = jnp.max(log_ab, axis=0, keepdims=True)      # (1, Ht)
        m_prev = mx_carry[...]
        m_new = jnp.maximum(m_prev, chunk_max)
        m_safe = jnp.where(m_new == -jnp.inf, 0.0, m_new)

        e = jnp.exp(log_ab - m_safe)                            # (Tt, Ht), in [0, 1]
        s_prev = s_carry[...] * jnp.exp(m_prev - m_safe)        # rescale carried sum
        ce = jnp.dot(tri, e, preferred_element_type=jnp.float32) + s_prev

        # Stay in log space until the end (avoids 0*inf -> NaN and overflow):
        # h = exp(log_a_star + logcumsumexp) = exp(log_a_star + m_safe + log(ce)).
        h = jnp.exp(log_a_star + m_safe + jnp.log(ce))
        if has_mask:
            h = jnp.where(masked, 0.0, h)
        o_ref[...] = h.astype(o_ref.dtype)

        # Carried state for the next time block.
        a_carry[...] = a_carry[...] + jnp.sum(log_a, axis=0, keepdims=True)
        mx_carry[...] = m_new
        s_carry[...] = ce[tt - 1:tt, :]                  # last row == sum(e) + s_prev

    return kernel


def mingru_forward(x, Wz, bz, Wh, bh, mask=None, *,
                   t_tile=128, h_tile=256, out_dtype=jnp.float32):
    """Parallel-mode MinGRU forward.  x: (B, T, D_in) -> h: (B, T, H).

    mask (optional): bool (B, T), True == padding position (output forced to 0).
    """
    B, T, Din = x.shape
    H = Wz.shape[1]

    # ---- pad H to a lane-dense multiple of 128 and pick the H tile ----
    Hp = _round_up(H, 128)
    Ht = h_tile if (Hp % h_tile == 0) else 128
    nH = Hp // Ht

    # ---- pick the time tile / pad T ----
    Tt = _round_up(T, 8) if T <= t_tile else t_tile
    Tp = _round_up(T, Tt)
    nT = Tp // Tt

    # bf16 activations into the MXU (f32 accumulate happens in-kernel).
    xp = x.astype(jnp.bfloat16)
    if Tp != T:
        xp = jnp.pad(xp, ((0, 0), (0, Tp - T), (0, 0)))

    # Mask is only needed if the caller supplied one or if we padded T
    # (T-padding rows are trailing, but they must not inflate the running max).
    has_mask = (mask is not None) or (Tp != T)
    if has_mask:
        mask_b = jnp.zeros((B, T), dtype=bool) if mask is None else mask.astype(bool)
        if Tp != T:
            mask_b = jnp.pad(mask_b, ((0, 0), (0, Tp - T)), constant_values=True)
        maskf = mask_b.astype(jnp.float32)[..., None]            # (B, Tp, 1)

    # Fused, H-padded, H-tiled weights: bf16 (nH, Din, 2*Ht); biases f32 (nH, 1, 2*Ht).
    Wz_p = jnp.pad(Wz, ((0, 0), (0, Hp - H))).astype(jnp.bfloat16)
    Wh_p = jnp.pad(Wh, ((0, 0), (0, Hp - H))).astype(jnp.bfloat16)
    bz_p = jnp.pad(bz, (0, Hp - H)).astype(jnp.float32)
    bh_p = jnp.pad(bh, (0, Hp - H)).astype(jnp.float32)
    Wz_t = jnp.transpose(Wz_p.reshape(Din, nH, Ht), (1, 0, 2))
    Wh_t = jnp.transpose(Wh_p.reshape(Din, nH, Ht), (1, 0, 2))
    Wf = jnp.concatenate([Wz_t, Wh_t], axis=-1)                  # (nH, Din, 2*Ht)
    bf = jnp.concatenate([bz_p.reshape(nH, 1, Ht),
                          bh_p.reshape(nH, 1, Ht)], axis=-1)     # (nH, 1, 2*Ht)

    # Grid: (nH, B, nT) — weight block only changes on the outermost axis;
    # time is innermost and "arbitrary" (carried scan state in VMEM scratch).
    x_spec = pl.BlockSpec((None, Tt, Din), lambda j, b, t: (b, t, 0))
    w_spec = pl.BlockSpec((None, Din, 2 * Ht), lambda j, b, t: (j, 0, 0))
    b_spec = pl.BlockSpec((None, 1, 2 * Ht), lambda j, b, t: (j, 0, 0))
    o_spec = pl.BlockSpec((None, Tt, Ht), lambda j, b, t: (b, t, j))

    if has_mask:
        in_specs = [x_spec,
                    pl.BlockSpec((None, Tt, 1), lambda j, b, t: (b, t, 0)),
                    w_spec, b_spec]
        operands = (xp, maskf, Wf, bf)
    else:
        in_specs = [x_spec, w_spec, b_spec]
        operands = (xp, Wf, bf)

    out = pl.pallas_call(
        _make_mingru_kernel(has_mask),
        out_shape=jax.ShapeDtypeStruct((B, Tp, Hp), out_dtype),
        grid_spec=pltpu.PrefetchScalarGridSpec(
            num_scalar_prefetch=0,
            grid=(nH, B, nT),
            in_specs=in_specs,
            out_specs=o_spec,
            scratch_shapes=[
                pltpu.VMEM((Tt, Tt), jnp.float32),   # lower-triangular ones (built once)
                pltpu.VMEM((1, Ht), jnp.float32),    # carried cumsum of log_a
                pltpu.VMEM((1, Ht), jnp.float32),    # carried running max
                pltpu.VMEM((1, Ht), jnp.float32),    # carried scaled running sum
            ],
        ),
        compiler_params=pltpu.CompilerParams(
            dimension_semantics=("parallel", "parallel", "arbitrary"),
            vmem_limit_bytes=48 * 1024 * 1024),
    )(*operands)

    return out[:, :T, :H]


def mingru_reference(x, Wz, bz, Wh, bh, mask=None):
    """Plain-JAX reference mirroring the PyTorch forward (parallel mode)."""
    k = x @ Wz + bz
    th = x @ Wh + bh
    log_z = -jax.nn.softplus(-k)
    log_one_minus_z = -jax.nn.softplus(k)
    log_tilde_h = jnp.where(th >= 0.0, jnp.log(jax.nn.relu(th) + 0.5),
                            -jax.nn.softplus(-th))
    log_a = log_one_minus_z
    log_b = log_z + log_tilde_h
    if mask is not None:
        m = mask[..., None]
        log_a = jnp.where(m, 0.0, log_a)
        log_b = jnp.where(m, 0.0, log_b)
    log_a_star = jnp.cumsum(log_a, axis=1)
    log_a_b_star = log_b - log_a_star
    if mask is not None:
        log_a_b_star = jnp.where(mask[..., None], -jnp.inf, log_a_b_star)
    log_cse = lax.cumlogsumexp(log_a_b_star, axis=1)   # == torch.logcumsumexp
    h = jnp.exp(log_a_star + log_cse)
    if mask is not None:
        h = jnp.where(mask[..., None], 0.0, h)
    return h


# TODO(synk): sequential mode (h_prev is not None) is a pure elementwise blend;
# not implemented here since the hot path of this module is the parallel scan.

if __name__ == "__main__":
    key = jax.random.PRNGKey(0)
    kx, kwz, kbz, kwh, kbh, kx2, kwz2, kbz2, kwh2, kbh2 = jax.random.split(key, 10)

    def linear_init(kw, kb, din, h):
        bound = 1.0 / (din ** 0.5)
        W = jax.random.uniform(kw, (din, h), jnp.float32, -bound, bound)
        b = jax.random.uniform(kb, (h,), jnp.float32, -bound, bound)
        return W, b

    def bf16_round(a):
        # Reference sees the same (bf16-representable) matmul operands as the kernel.
        return a.astype(jnp.bfloat16).astype(jnp.float32)

    # Tolerances are modest because the kernel feeds bf16 operands to the MXU and
    # the blocked scan accumulates in a different order than jnp.cumsum.
    RTOL, ATOL = 2e-2, 1e-3

    # ---- test 1: small, single time chunk, no mask (fast no-mask kernel path) ----
    B, T, D_IN, H = 2, 8, 16, 32
    x = jax.random.normal(kx, (B, T, D_IN), dtype=jnp.float32)
    Wz, bz = linear_init(kwz, kbz, D_IN, H)
    Wh, bh = linear_init(kwh, kbh, D_IN, H)

    h_kernel = jax.block_until_ready(mingru_forward(x, Wz, bz, Wh, bh))
    h_ref = jax.block_until_ready(
        mingru_reference(bf16_round(x), bf16_round(Wz), bz, bf16_round(Wh), bh))
    assert h_kernel.shape == (B, T, H)
    assert bool(jnp.isfinite(h_kernel).all())
    assert jnp.allclose(h_kernel, h_ref, rtol=RTOL, atol=ATOL), (
        float(jnp.max(jnp.abs(h_kernel - h_ref))))

    # ---- test 2: multiple time chunks + padding mask + two H tiles ----
    # Exercises the carried scan state (nT = 4), the (nH, B, nT) grid reorder
    # (nH = 2) and the masked-kernel path.
    T2, H2 = 64, 192
    x2 = jax.random.normal(kx2, (B, T2, D_IN), dtype=jnp.float32)
    Wz2, bz2 = linear_init(kwz2, kbz2, D_IN, H2)
    Wh2, bh2 = linear_init(kwh2, kbh2, D_IN, H2)
    lengths = jnp.array([50, 64])
    mask2 = jnp.arange(T2)[None, :] >= lengths[:, None]          # True == padding

    h2_kernel = jax.block_until_ready(
        mingru_forward(x2, Wz2, bz2, Wh2, bh2, mask=mask2, t_tile=16, h_tile=128))
    h2_ref = jax.block_until_ready(
        mingru_reference(bf16_round(x2), bf16_round(Wz2), bz2,
                         bf16_round(Wh2), bh2, mask=mask2))
    assert h2_kernel.shape == (B, T2, H2)
    assert bool(jnp.isfinite(h2_kernel).all())
    assert jnp.allclose(h2_kernel, h2_ref, rtol=RTOL, atol=ATOL), (
        float(jnp.max(jnp.abs(h2_kernel - h2_ref))))

    print("KERNEL_OK")
</pallas_src>

<mosaic_0001>
module attributes {stable_mosaic.version = 11 : i64} {
  func.func @kernel(%arg0: i32, %arg1: i32, %arg2: i32, %arg3: memref<1x8x16xbf16, #tpu.memory_space<vmem>>, %arg4: memref<1x16x256xbf16, #tpu.memory_space<vmem>>, %arg5: memref<1x1x256xf32, #tpu.memory_space<vmem>>, %arg6: memref<1x8x128xf32, #tpu.memory_space<vmem>>, %arg7: memref<8x8xf32, #tpu.memory_space<vmem>>, %arg8: memref<1x128xf32, #tpu.memory_space<vmem>>, %arg9: memref<1x128xf32, #tpu.memory_space<vmem>>, %arg10: memref<1x128xf32, #tpu.memory_space<vmem>>) attributes {dimension_semantics = [#tpu.dimension_semantics<parallel>, #tpu.dimension_semantics<parallel>, #tpu.dimension_semantics<arbitrary>], iteration_bounds = array<i64: 1, 2, 1>, scalar_prefetch = 0 : i64, scratch_operands = 4 : i64, tpu.core_type = #tpu.core_type<tc>, window_params = [{transform_indices = @transform_0, window_bounds = array<i64: 1, 8, 16>}, {transform_indices = @transform_1, window_bounds = array<i64: 1, 16, 256>}, {transform_indices = @transform_2, window_bounds = array<i64: 1, 1, 256>}, {transform_indices = @transform_3, window_bounds = array<i64: 1, 8, 128>}]} {
    %c0_i32 = arith.constant 0 : i32
    %0 = arith.cmpi eq, %arg2, %c0_i32 : i32
    %1 = arith.extui %0 : i1 to i32
    %c0_i32_0 = arith.constant 0 : i32
    %2 = arith.cmpi ne, %1, %c0_i32_0 : i32
    scf.if %2 {
      %81 = tpu.iota {dimensions = array<i32: 0>} : vector<8x8xi32>
      %82 = tpu.iota {dimensions = array<i32: 1>} : vector<8x8xi32>
      %83 = arith.cmpi sge, %81, %82 : vector<8x8xi32>
      %84 = arith.extui %83 : vector<8x8xi1> to vector<8x8xi32>
      %85 = arith.sitofp %84 : vector<8x8xi32> to vector<8x8xf32>
      %c0_42 = arith.constant 0 : index
      %c0_43 = arith.constant 0 : index
      %86 = vector.load %arg7[%c0_42, %c0_43] : memref<8x8xf32, #tpu.memory_space<vmem>>, vector<8x8xf32>
      tpu.vector_store %arg7[%c0_42, %c0_43], %85 {strides = array<i32>} : memref<8x8xf32, #tpu.memory_space<vmem>>, vector<8x8xf32>,
      %cst_44 = arith.constant 0.000000e+00 : f32
      %87 = vector.broadcast %cst_44 : f32 to vector<1x128xf32>
      %c0_45 = arith.constant 0 : index
      %c0_46 = arith.constant 0 : index
      %88 = vector.load %arg8[%c0_45, %c0_46] : memref<1x128xf32, #tpu.memory_space<vmem>>, vector<1x128xf32>
      tpu.vector_store %arg8[%c0_45, %c0_46], %87 {strides = array<i32>} : memref<1x128xf32, #tpu.memory_space<vmem>>, vector<1x128xf32>,
      %cst_47 = arith.constant 0xFF800000 : f32
      %89 = vector.broadcast %cst_47 : f32 to vector<1x128xf32>
      %c0_48 = arith.constant 0 : index
      %c0_49 = arith.constant 0 : index
      %90 = vector.load %arg9[%c0_48, %c0_49] : memref<1x128xf32, #tpu.memory_space<vmem>>, vector<1x128xf32>
      tpu.vector_store %arg9[%c0_48, %c0_49], %89 {strides = array<i32>} : memref<1x128xf32, #tpu.memory_space<vmem>>, vector<1x128xf32>,
      %cst_50 = arith.constant 0.000000e+00 : f32
      %91 = vector.broadcast %cst_50 : f32 to vector<1x128xf32>
      %c0_51 = arith.constant 0 : index
      %c0_52 = arith.constant 0 : index
      %92 = vector.load %arg10[%c0_51, %c0_52] : memref<1x128xf32, #tpu.memory_space<vmem>>, vector<1x128xf32>
      tpu.vector_store %arg10[%c0_51, %c0_52], %91 {strides = array<i32>} : memref<1x128xf32, #tpu.memory_space<vmem>>, vector<1x128xf32>,
    } else {
    }
    %c0 = arith.constant 0 : index
    %c0_1 = arith.constant 0 : index
    %c0_2 = arith.constant 0 : index
    %3 = vector.load %arg3[%c0, %c0_1, %c0_2] : memref<1x8x16xbf16, #tpu.memory_space<vmem>>, vector<1x8x16xbf16>
    %4 = vector.shape_cast %3 : vector<1x8x16xbf16> to vector<8x16xbf16>
    %c0_3 = arith.constant 0 : index
    %c0_4 = arith.constant 0 : index
    %c0_5 = arith.constant 0 : index
    %5 = vector.load %arg4[%c0_3, %c0_4, %c0_5] : memref<1x16x256xbf16, #tpu.memory_space<vmem>>, vector<1x16x256xbf16>
    %6 = vector.shape_cast %5 : vector<1x16x256xbf16> to vector<16x256xbf16>
    %cst = arith.constant dense<0.000000e+00> : vector<8x256xf32>
    %7 = tpu.matmul %4, %6, %cst {dimension_numbers = #tpu.dot_dimension_numbers<[1], [0], [0], [1], [0, 0, 1, 1], [], []>} : vector<8x16xbf16>, vector<16x256xbf16>, vector<8x256xf32> -> vector<8x256xf32>
    %c0_6 = arith.constant 0 : index
    %c0_7 = arith.constant 0 : index
    %c0_8 = arith.constant 0 : index
    %8 = vector.load %arg5[%c0_6, %c0_7, %c0_8] : memref<1x1x256xf32, #tpu.memory_space<vmem>>, vector<1x1x256xf32>
    %9 = vector.shape_cast %8 : vector<1x1x256xf32> to vector<1x256xf32>
    %10 = vector.broadcast %9 : vector<1x256xf32> to vector<8x256xf32>
    %11 = arith.addf %7, %10 : vector<8x256xf32>
    %12 = vector.extract_strided_slice %11 {offsets = [0, 0], sizes = [8, 128], strides = [1, 1]} : vector<8x256xf32> to vector<8x128xf32>
    %13 = vector.extract_strided_slice %11 {offsets = [0, 128], sizes = [8, 128], strides = [1, 1]} : vector<8x256xf32> to vector<8x128xf32>
    %cst_9 = arith.constant 0.000000e+00 : f32
    %14 = vector.broadcast %cst_9 : f32 to vector<8x128xf32>
    %15 = arith.maximumf %12, %14 : vector<8x128xf32>
    %16 = math.absf %12 : vector<8x128xf32>
    %cst_10 = arith.constant 0.000000e+00 : f32
    %17 = vector.broadcast %cst_10 : f32 to vector<8x128xf32>
    %18 = arith.subf %17, %16 : vector<8x128xf32>
    %19 = math.exp %18 : vector<8x128xf32>
    %cst_11 = arith.constant 1.000000e+00 : f32
    %20 = vector.broadcast %cst_11 : f32 to vector<8x128xf32>
    %21 = arith.addf %20, %19 : vector<8x128xf32>
    %22 = math.log %21 : vector<8x128xf32>
    %23 = arith.addf %15, %22 : vector<8x128xf32>
    %24 = arith.subf %12, %23 : vector<8x128xf32>
    %cst_12 = arith.constant 0.000000e+00 : f32
    %25 = vector.broadcast %cst_12 : f32 to vector<8x128xf32>
    %26 = arith.subf %25, %23 : vector<8x128xf32>
    %cst_13 = arith.constant 0.000000e+00 : f32
    %27 = vector.broadcast %cst_13 : f32 to vector<8x128xf32>
    %28 = arith.minimumf %13, %27 : vector<8x128xf32>
    %29 = math.exp %28 : vector<8x128xf32>
    %cst_14 = arith.constant 0.000000e+00 : f32
    %30 = vector.broadcast %cst_14 : f32 to vector<8x128xf32>
    %31 = arith.cmpf oge, %13, %30 : vector<8x128xf32>
    %cst_15 = arith.constant 5.000000e-01 : f32
    %32 = vector.broadcast %cst_15 : f32 to vector<8x128xf32>
    %33 = arith.addf %13, %32 : vector<8x128xf32>
    %cst_16 = arith.constant 1.000000e+00 : f32
    %34 = vector.broadcast %cst_16 : f32 to vector<8x128xf32>
    %35 = arith.addf %34, %29 : vector<8x128xf32>
    %36 = arith.select %31, %33, %35 : vector<8x128xi1>, vector<8x128xf32>
    %37 = math.log %36 : vector<8x128xf32>
    %38 = arith.subf %13, %37 : vector<8x128xf32>
    %39 = arith.select %31, %37, %38 : vector<8x128xi1>, vector<8x128xf32>
    %40 = arith.addf %24, %39 : vector<8x128xf32>
    %c0_17 = arith.constant 0 : index
    %c0_18 = arith.constant 0 : index
    %41 = vector.load %arg7[%c0_17, %c0_18] : memref<8x8xf32, #tpu.memory_space<vmem>>, vector<8x8xf32>
    %cst_19 = arith.constant dense<0.000000e+00> : vector<8x128xf32>
    %42 = tpu.matmul %41, %26, %cst_19 {dimension_numbers = #tpu.dot_dimension_numbers<[1], [0], [0], [1], [0, 0, 1, 1], [], []>} : vector<8x8xf32>, vector<8x128xf32>, vector<8x128xf32> -> vector<8x128xf32>
    %c0_20 = arith.constant 0 : index
    %c0_21 = arith.constant 0 : index
    %43 = vector.load %arg8[%c0_20, %c0_21] : memref<1x128xf32, #tpu.memory_space<vmem>>, vector<1x128xf32>
    %44 = vector.broadcast %43 : vector<1x128xf32> to vector<8x128xf32>
    %45 = arith.addf %42, %44 : vector<8x128xf32>
    %46 = arith.subf %40, %45 : vector<8x128xf32>
    %cst_22 = arith.constant dense<0xFF800000> : vector<128xf32>
    %47 = vector.multi_reduction <maximumf>, %46, %cst_22 [0] : vector<8x128xf32> to vector<128xf32>
    %48 = vector.shape_cast %47 : vector<128xf32> to vector<1x128xf32>
    %c0_23 = arith.constant 0 : index
    %c0_24 = arith.constant 0 : index
    %49 = vector.load %arg9[%c0_23, %c0_24] : memref<1x128xf32, #tpu.memory_space<vmem>>, vector<1x128xf32>
    %50 = arith.maximumf %49, %48 : vector<1x128xf32>
    %cst_25 = arith.constant 0xFF800000 : f32
    %51 = vector.broadcast %cst_25 : f32 to vector<1x128xf32>
    %52 = arith.cmpf oeq, %50, %51 : vector<1x128xf32>
    %cst_26 = arith.constant 0.000000e+00 : f32
    %53 = vector.broadcast %cst_26 : f32 to vector<1x128xf32>
    %54 = arith.select %52, %53, %50 : vector<1x128xi1>, vector<1x128xf32>
    %55 = vector.broadcast %54 : vector<1x128xf32> to vector<8x128xf32>
    %56 = arith.subf %46, %55 : vector<8x128xf32>
    %57 = math.exp %56 : vector<8x128xf32>
    %c0_27 = arith.constant 0 : index
    %c0_28 = arith.constant 0 : index
    %58 = vector.load %arg10[%c0_27, %c0_28] : memref<1x128xf32, #tpu.memory_space<vmem>>, vector<1x128xf32>
    %59 = arith.subf %49, %54 : vector<1x128xf32>
    %60 = math.exp %59 : vector<1x128xf32>
    %61 = arith.mulf %58, %60 : vector<1x128xf32>
    %cst_29 = arith.constant dense<0.000000e+00> : vector<8x128xf32>
    %62 = tpu.matmul %41, %57, %cst_29 {dimension_numbers = #tpu.dot_dimension_numbers<[1], [0], [0], [1], [0, 0, 1, 1], [], []>} : vector<8x8xf32>, vector<8x128xf32>, vector<8x128xf32> -> vector<8x128xf32>
    %63 = vector.broadcast %61 : vector<1x128xf32> to vector<8x128xf32>
    %64 = arith.addf %62, %63 : vector<8x128xf32>
    %65 = vector.broadcast %54 : vector<1x128xf32> to vector<8x128xf32>
    %66 = arith.addf %45, %65 : vector<8x128xf32>
    %67 = math.log %64 : vector<8x128xf32>
    %68 = arith.addf %66, %67 : vector<8x128xf32>
    %69 = math.exp %68 : vector<8x128xf32>
    %c0_30 = arith.constant 0 : index
    %c0_31 = arith.constant 0 : index
    %c0_32 = arith.constant 0 : index
    %70 = vector.load %arg6[%c0_30, %c0_31, %c0_32] : memref<1x8x128xf32, #tpu.memory_space<vmem>>, vector<1x8x128xf32>
    %71 = vector.shape_cast %70 : vector<1x8x128xf32> to vector<8x128xf32>
    %72 = vector.shape_cast %69 : vector<8x128xf32> to vector<1x8x128xf32>
    tpu.vector_store %arg6[%c0_30, %c0_31, %c0_32], %72 {strides = array<i32>} : memref<1x8x128xf32, #tpu.memory_space<vmem>>, vector<1x8x128xf32>,
    %c0_33 = arith.constant 0 : index
    %c0_34 = arith.constant 0 : index
    %73 = vector.load %arg8[%c0_33, %c0_34] : memref<1x128xf32, #tpu.memory_space<vmem>>, vector<1x128xf32>
    %cst_35 = arith.constant dense<0.000000e+00> : vector<128xf32>
    %74 = vector.multi_reduction <add>, %26, %cst_35 [0] : vector<8x128xf32> to vector<128xf32>
    %75 = vector.shape_cast %74 : vector<128xf32> to vector<1x128xf32>
    %76 = arith.addf %73, %75 : vector<1x128xf32>
    %c0_36 = arith.constant 0 : index
    %c0_37 = arith.constant 0 : index
    %77 = vector.load %arg8[%c0_36, %c0_37] : memref<1x128xf32, #tpu.memory_space<vmem>>, vector<1x128xf32>
    tpu.vector_store %arg8[%c0_36, %c0_37], %76 {strides = array<i32>} : memref<1x128xf32, #tpu.memory_space<vmem>>, vector<1x128xf32>,
    %c0_38 = arith.constant 0 : index
    %c0_39 = arith.constant 0 : index
    %78 = vector.load %arg9[%c0_38, %c0_39] : memref<1x128xf32, #tpu.memory_space<vmem>>, vector<1x128xf32>
    tpu.vector_store %arg9[%c0_38, %c0_39], %50 {strides = array<i32>} : memref<1x128xf32, #tpu.memory_space<vmem>>, vector<1x128xf32>,
    %79 = vector.extract_strided_slice %64 {offsets = [7, 0], sizes = [1, 128], strides = [1, 1]} : vector<8x128xf32> to vector<1x128xf32>
    %c0_40 = arith.constant 0 : index
    %c0_41 = arith.constant 0 : index
    %80 = vector.load %arg10[%c0_40, %c0_41] : memref<1x128xf32, #tpu.memory_space<vmem>>, vector<1x128xf32>
    tpu.vector_store %arg10[%c0_40, %c0_41], %79 {strides = array<i32>} : memref<1x128xf32, #tpu.memory_space<vmem>>, vector<1x128xf32>,
    return
  }
  func.func @transform_0(%arg0: i32, %arg1: i32, %arg2: i32) -> (i32, i32, i32) {
    %c0_i32 = arith.constant 0 : i32
    %c0_i32_0 = arith.constant 0 : i32
    return %arg1, %arg2, %c0_i32 : i32, i32, i32
  }
  func.func @transform_1(%arg0: i32, %arg1: i32, %arg2: i32) -> (i32, i32, i32) {
    %c0_i32 = arith.constant 0 : i32
    %c0_i32_0 = arith.constant 0 : i32
    %c0_i32_1 = arith.constant 0 : i32
    return %arg0, %c0_i32, %c0_i32_0 : i32, i32, i32
  }
  func.func @transform_2(%arg0: i32, %arg1: i32, %arg2: i32) -> (i32, i32, i32) {
    %c0_i32 = arith.constant 0 : i32
    %c0_i32_0 = arith.constant 0 : i32
    %c0_i32_1 = arith.constant 0 : i32
    return %arg0, %c0_i32, %c0_i32_0 : i32, i32, i32
  }
  func.func @transform_3(%arg0: i32, %arg1: i32, %arg2: i32) -> (i32, i32, i32) {
    %c0_i32 = arith.constant 0 : i32
    return %arg1, %arg2, %arg0 : i32, i32, i32
  }
}

</mosaic_0001>

<llo_original>
// kernel: tpu_custom_call.1
$region0: #{tpu_custom_call.1}
  #allocation0 [shape = 'u32[]', space=smem, size = 0x4, offset = 0x4, fixed_abs, tag = 'smem constant byte address 0x4 - core index']
  #allocation1 [shape = 'u32[144,128]{1,0:T(1,128)}', space=vmem, size = 0x12000, scoped, tag = 'internal scratch']
  #allocation2 [shape = 'f32[8,8]{1,0:T(8,128)}', space=vmem, size = 0x1000, scoped, tag = 'scratch operand']
  #allocation3 [shape = 'f32[1,128]{1,0:T(1,128)}', space=vmem, size = 0x200, scoped, tag = 'scratch operand']
  #allocation4 [shape = 'f32[1,128]{1,0:T(1,128)}', space=vmem, size = 0x200, scoped, tag = 'scratch operand']
  #allocation5 [shape = 'f32[1,128]{1,0:T(1,128)}', space=vmem, size = 0x200, scoped, tag = 'scratch operand']
  %s0 = inlined_call_operand.hbm [shape: bf16[2,8,16], index: 0, kind: input, shape index: {}]
  %s1 = inlined_call_operand.hbm [shape: bf16[1,16,256], index: 1, kind: input, shape index: {}]
  %s2 = inlined_call_operand.vmem [shape: f32[1,1,256], index: 2, kind: input, shape index: {}]
  %s3 = inlined_call_operand.hbm [shape: f32[2,8,128], index: 3, kind: output, shape index: {}]
  %s4 = sld [smem:[#allocation0]]
  $region57: #{tpu_custom_call.1} parent=0
    _
  %s6 = ssub.s32 1, %s4
  %s7 = scalar_select 0, %s6, %s4
  $region1: #{tpu_custom_call.1} parent=0
    #allocation6 [shape = 'u8[4096]{0}', space=vmem, size = 0x1000, scoped, tag = 'input window, operand 0']
    #allocation7 [shape = 's32[2]{0}', space=sflag, size = 0x8, scoped, tag = 'scoped memory for tpu_custom_call.1']
    #allocation8 [shape = 's32[2]{0}', space=sflag, size = 0x8, scoped, tag = 'scoped memory for tpu_custom_call.1']
    #allocation9 [shape = 'u8[8192]{0}', space=vmem, size = 0x2000, scoped, tag = 'input window, operand 1, single buffered']
    #allocation10 [shape = 's32[1]{0}', space=sflag, size = 0x4, scoped, tag = 'scoped memory for tpu_custom_call.1']
    #allocation11 [shape = 'u8[8192]{0}', space=vmem, size = 0x2000, scoped, tag = 'output window, operand 0']
    %8 = vsyncpa [#allocation7], 0
    %s9 = scalar_lea.sflag [#allocation7], 1
    %10 = vsyncpa %s9, 0
    %11 = vsyncpa [#allocation10], 0
    %12 = vsyncpa [#allocation8], 0
    %s13 = scalar_lea.sflag [#allocation8], 1
    %14 = vsyncpa %s13, 0
    loop: start=0, step=1, limit=4
    $region2: #{tpu_custom_call.1} parent=1 // loop_pre_header
      _
    $region3: #{tpu_custom_call.1} parent=1 // loop_header
      %s16 = sphi 0, %s20
      %p17 = scmp.ge.s32.totalorder %s16, 4
      %s23 = sphi 0, %s42
      %s24 = sphi 0, %s38
      %s25 = sphi 0, %s34
      %s26 = sphi 0, %s23
      %s27 = sphi 0, %s24
      %s28 = sphi 0, %s25
      %s29 = sphi 0, %s26
      %s30 = sphi 0, %s27
      %s31 = sphi 0, %s28
      %s47 = sphi 0, %s49
      %s50 = sphi 0, %s47
      %s51 = sphi 0, %s50
      %s67 = sphi 0, %s51
      %s73 = sphi 0, %s75
      %s76 = sphi 0, %s73
      %s77 = sphi 0, %s76
      %s93 = sphi 0, %s77
      %s99 = sphi 0, %s101
      %s102 = sphi 0, %s99
      %s103 = sphi 0, %s102
      %s119 = sphi 0, %s103
      %s129 = sphi 0, %s131
      %s132 = sphi 0, %s129
      %s133 = sphi 0, %s132
      %s149 = sphi 0, %s133
    $region4: #{tpu_custom_call.1} parent=1 // loop_header_branch
      %19 = sbr.rel (%p17) target = $region8
    $region5: #{tpu_custom_call.1} parent=1 // loop_body
      %s21 = ssub.s32 %s16, 1
      %s22 = ssub.s32 %s16, 2
      %s32 = sadd.s32 1, %s25
      %p33 = scmp.ge.s32.totalorder %s32, 1
      %s34 = scalar_select %p33, 0, %s32
      %s35 = sadd.s32 1, %s24
      %s36 = scalar_select %p33, %s35, %s24
      %p37 = scmp.ge.s32.totalorder %s36, 2
      %s38 = scalar_select %p37, 0, %s36
      %s39 = sadd.s32 1, %s23
      %s40 = scalar_select %p37, %s39, %s23
      %p41 = scmp.ge.s32.totalorder %s40, 1
      %s42 = scalar_select %p41, 0, %s40
      %s43 = ssub.s32 %s24, %s38
      %s44 = ssub.s32 %s25, %s34
      %s45 = sor.u32 %s43, %s44
      %p46 = scmp.eq.s32.totalorder %s45, 0
      %s48 = sadd.s32 %s47, 1
      %s49 = scalar_select %p46, %s47, %s48
      %p52 = pneg %p46
      %p53 = scmp.eq.s32.totalorder %s16, 1
      %p54 = por %p52, %p53
      %p55 = scmp.ne.s32.totalorder %s47, %s50
      %p56 = scmp.eq.s32.totalorder %s16, 0
      %p57 = por %p55, %p56
      %p58 = scmp.ne.s32.totalorder %s47, %s50
      %p59 = scmp.eq.s32.totalorder %s21, 1
      %p60 = por %p58, %p59
      %p61 = scmp.ne.s32.totalorder %s50, %s51
      %p62 = scmp.eq.s32.totalorder %s21, 0
      %p63 = por %p61, %p62
      %p64 = scmp.ne.s32.totalorder %s50, %s51
      %p65 = scmp.eq.s32.totalorder %s22, 1
      %p66 = por %p64, %p65
      %p68 = scmp.ne.s32.totalorder %s51, %s67
      %p69 = scmp.eq.s32.totalorder %s22, 0
      %p70 = por %p68, %p69
      %s71 = ssub.s32 %s23, %s42
      %p72 = scmp.eq.s32.totalorder %s71, 0
      %s74 = sadd.s32 %s73, 1
      %s75 = scalar_select %p72, %s73, %s74
      %p78 = pneg %p72
      %p79 = scmp.eq.s32.totalorder %s16, 1
      %p80 = por %p78, %p79
      %p81 = scmp.ne.s32.totalorder %s73, %s76
      %p82 = scmp.eq.s32.totalorder %s16, 0
      %p83 = por %p81, %p82
      %p84 = scmp.ne.s32.totalorder %s73, %s76
      %p85 = scmp.eq.s32.totalorder %s21, 1
      %p86 = por %p84, %p85
      %p87 = scmp.ne.s32.totalorder %s76, %s77
      %p88 = scmp.eq.s32.totalorder %s21, 0
      %p89 = por %p87, %p88
      %p90 = scmp.ne.s32.totalorder %s76, %s77
      %p91 = scmp.eq.s32.totalorder %s22, 1
      %p92 = por %p90, %p91
      %p94 = scmp.ne.s32.totalorder %s77, %s93
      %p95 = scmp.eq.s32.totalorder %s22, 0
      %p96 = por %p94, %p95
      %s97 = ssub.s32 %s23, %s42
      %p98 = scmp.eq.s32.totalorder %s97, 0
      %s100 = sadd.s32 %s99, 1
      %s101 = scalar_select %p98, %s99, %s100
      %p104 = pneg %p98
      %p105 = scmp.eq.s32.totalorder %s16, 1
      %p106 = por %p104, %p105
      %p107 = scmp.ne.s32.totalorder %s99, %s102
      %p108 = scmp.eq.s32.totalorder %s16, 0
      %p109 = por %p107, %p108
      %p110 = scmp.ne.s32.totalorder %s99, %s102
      %p111 = scmp.eq.s32.totalorder %s21, 1
      %p112 = por %p110, %p111
      %p113 = scmp.ne.s32.totalorder %s102, %s103
      %p114 = scmp.eq.s32.totalorder %s21, 0
      %p115 = por %p113, %p114
      %p116 = scmp.ne.s32.totalorder %s102, %s103
      %p117 = scmp.eq.s32.totalorder %s22, 1
      %p118 = por %p116, %p117
      %p120 = scmp.ne.s32.totalorder %s103, %s119
      %p121 = scmp.eq.s32.totalorder %s22, 0
      %p122 = por %p120, %p121
      %s123 = ssub.s32 %s24, %s38
      %s124 = ssub.s32 %s25, %s34
      %s125 = sor.u32 %s123, %s124
      %s126 = ssub.s32 %s23, %s42
      %s127 = sor.u32 %s125, %s126
      %p128 = scmp.eq.s32.totalorder %s127, 0
      %s130 = sadd.s32 %s129, 1
      %s131 = scalar_select %p128, %s129, %s130
      %p134 = pneg %p128
      %p135 = scmp.eq.s32.totalorder %s16, 1
      %p136 = por %p134, %p135
      %p137 = scmp.ne.s32.totalorder %s129, %s132
      %p138 = scmp.eq.s32.totalorder %s16, 0
      %p139 = por %p137, %p138
      %p140 = scmp.ne.s32.totalorder %s129, %s132
      %p141 = scmp.eq.s32.totalorder %s21, 1
      %p142 = por %p140, %p141
      %p143 = scmp.ne.s32.totalorder %s132, %s133
      %p144 = scmp.eq.s32.totalorder %s21, 0
      %p145 = por %p143, %p144
      %p146 = scmp.ne.s32.totalorder %s132, %s133
      %p147 = scmp.eq.s32.totalorder %s22, 1
      %p148 = por %p146, %p147
      %p150 = scmp.ne.s32.totalorder %s133, %s149
      %p151 = scmp.eq.s32.totalorder %s22, 0
      %p152 = por %p150, %p151
      %p153 = scmp.le.s32.totalorder 1, %s16
      %p154 = scmp.lt.s32.totalorder %s16, 3
      %p155 = pnand %p153, %p154
      %p156 = pneg %p155
      // Predicated region
      $region9: #{tpu_custom_call.1} parent=5 // pred_check
        _
      $region10: #{tpu_custom_call.1} parent=5 // pred_check_branch
        %158 = sbr.rel (%p155) target = $region12
      $region11: #{tpu_custom_call.1} parent=5 // pred_region
        %s159 = ssub.s32 %s16, 1
        // Predicated region
        $region13: #{tpu_custom_call.1} parent=11 // pred_check
          %p160 = pneg %p89
        $region14: #{tpu_custom_call.1} parent=11 // pred_check_branch
          %162 = sbr.rel (%p160) target = $region16
        $region15: #{tpu_custom_call.1} parent=11 // pred_region
          %s164 = ssub.s32 256, 256
          %165 = vsyncadd [#allocation10], %s164
          %s166 = smul.addr %s26, 4
          %s167 = smul.addr %s166, 64
          %s168 = scalar_lea.hbm %s1, %s167
          %s169 = sshll.u32 [#allocation9], 4
          %s170 = int_to_ptr.vmem [resolvable:$true] %s169
          %175 = dma.hbm_to_vmem [thread:$0]  %s168, 256, %s170, [#allocation10], 128, 128, 8
        $region16: #{tpu_custom_call.1} parent=11 // pred_fallthru
          _
        // Predicated region
        $region17: #{tpu_custom_call.1} parent=11 // pred_check
          %p176 = pneg %p115
        $region18: #{tpu_custom_call.1} parent=11 // pred_check_branch
          %178 = sbr.rel (%p176) target = $region20
        $region19: #{tpu_custom_call.1} parent=11 // pred_region
          %p179 = scmp.lt.s32.totalorder %s26, 0
          %s180 = scalar_select %p179, %s26, 0
          %s181 = smul.addr %s180, 2
          %s182 = scalar_lea.vmem %s2, %s181
        $region20: #{tpu_custom_call.1} parent=11 // pred_fallthru
          _
      $region12: #{tpu_custom_call.1} parent=5 // pred_fallthru
        _
      %p183 = scmp.lt.s32.totalorder %s16, 2
      // Predicated region
      $region21: #{tpu_custom_call.1} parent=5 // pred_check
        %p184 = pneg %p183
      $region22: #{tpu_custom_call.1} parent=5 // pred_check_branch
        %186 = sbr.rel (%p184) target = $region24
      $region23: #{tpu_custom_call.1} parent=5 // pred_region
        // Predicated region
        $region25: #{tpu_custom_call.1} parent=23 // pred_check
          %p187 = pneg %p57
        $region26: #{tpu_custom_call.1} parent=23 // pred_check_branch
          %189 = sbr.rel (%p187) target = $region28
        $region27: #{tpu_custom_call.1} parent=23 // pred_region
          %s190 = sand.u32 %s47, 1
          %s191 = scalar_lea.sflag [#allocation7], %s190
          %s192 = sand.u32 %s47, 1
          %s193 = smul.addr %s192, 4
          %s194 = scalar_lea.vmem [#allocation6], %s193
          %s196 = ssub.s32 64, 64
          %197 = vsyncadd %s191, %s196
          %s198 = sadd.s32 %s25, %s24
          %s199 = smul.addr %s198, 64
          %s200 = scalar_lea.hbm %s0, %s199
          %s202 = sshll.u32 %s194, 4
          %s203 = int_to_ptr.vmem [resolvable:$true] %s202
          %205 = dma.hbm_to_vmem [thread:$0]  %s200, 64, %s203, %s191
        $region28: #{tpu_custom_call.1} parent=23 // pred_fallthru
          _
      $region24: #{tpu_custom_call.1} parent=5 // pred_fallthru
        _
      %p206 = scmp.le.s32.totalorder 1, %s16
      %p207 = scmp.lt.s32.totalorder %s16, 3
      %p208 = pnand %p206, %p207
      %p209 = pneg %p208
      // Predicated region
      $region29: #{tpu_custom_call.1} parent=5 // pred_check
        _
      $region30: #{tpu_custom_call.1} parent=5 // pred_check_branch
        %211 = sbr.rel (%p208) target = $region32
      $region31: #{tpu_custom_call.1} parent=5 // pred_region
        %s212 = ssub.s32 %s16, 1
        %s213 = sand.u32 %s50, 1
        %s214 = scalar_lea.sflag [#allocation7], %s213
        %s215 = sand.u32 %s50, 1
        %s216 = smul.addr %s215, 4
        %s217 = scalar_lea.vmem [#allocation6], %s216
        // Predicated region
        $region33: #{tpu_custom_call.1} parent=31 // pred_check
          %p218 = pneg %p63
        $region34: #{tpu_custom_call.1} parent=31 // pred_check_branch
          %220 = sbr.rel (%p218) target = $region36
        $region35: #{tpu_custom_call.1} parent=31 // pred_region
          %221 = dma.done %s214, 64
        $region36: #{tpu_custom_call.1} parent=31 // pred_fallthru
          _
        // Predicated region
        $region37: #{tpu_custom_call.1} parent=31 // pred_check
          %p222 = pneg %p89
        $region38: #{tpu_custom_call.1} parent=31 // pred_check_branch
          %224 = sbr.rel (%p222) target = $region40
        $region39: #{tpu_custom_call.1} parent=31 // pred_region
          %225 = dma.done [#allocation10], 256
        $region40: #{tpu_custom_call.1} parent=31 // pred_fallthru
          _
        %s226 = sand.u32 %s50, 1
        %s227 = scalar_lea.sflag [#allocation7], %s226
        %s228 = sand.u32 %s50, 1
        %s229 = smul.addr %s228, 4
        %s230 = scalar_lea.vmem [#allocation6], %s229
        %p231 = pneg %p63
        %p232 = pneg %p60
        %p233 = pneg %p89
        %p234 = pneg %p86
        %p235 = scmp.lt.s32.totalorder %s26, 0
        %s236 = scalar_select %p235, %s26, 0
        %s237 = smul.addr %s236, 2
        %s238 = scalar_lea.vmem %s2, %s237
        %p239 = pneg %p115
        %p240 = pneg %p112
        %p241 = pneg %p145
        %p242 = pneg %p142
        %s243 = sand.u32 %s132, 1
        %s244 = scalar_lea.sflag [#allocation8], %s243
        %s245 = sand.u32 %s132, 1
        %s246 = smul.addr %s245, 8
        %s247 = scalar_lea.vmem [#allocation11], %s246
        %p248 = scmp.lt.s32.totalorder %s26, 0
        %s249 = scalar_select %p248, %s26, 0
        %s250 = smul.addr %s249, 2
        %s251 = scalar_lea.vmem %s2, %s250
        %p253 = scmp.eq.s32.totalorder %s28, 0
        // Predicated region
        $region41: #{tpu_custom_call.1} parent=31 // pred_check
          %p254 = pneg %p253
        $region42: #{tpu_custom_call.1} parent=31 // pred_check_branch
          %256 = sbr.rel (%p254) target = $region44
        $region43: #{tpu_custom_call.1} parent=31 // pred_region
          %v257 = vlaneseq
          %v258 = vshrl.u32 %v257, 7
          %v259 = vlaneseq
          %v260 = vand.u32 %v259, 127
          %vm261 = vcmp.ge.s32.totalorder %v258, %v260
          %v262 = vsel %vm261, 1, 0
          %v263 = vcvt.s32.f32 %v262
          %vm264 = vcmask 64512
          %265 = vst.msk [vmem:[#allocation2] sm:$0xff] %vm264, %v263
          %266 = vst [vmem:[#allocation3] sm:$0x1] 0.0
          %267 = vst [vmem:[#allocation4] sm:$0x1] -inf
          %268 = vst [vmem:[#allocation5] sm:$0x1] 0.0
        $region44: #{tpu_custom_call.1} parent=31 // pred_fallthru
          _
        %v269 = vld [vmem:[%s217] sm:$0xf]
        %v270 = vld [vmem:[#allocation9] sm:$0xff]
        %v271 = vld [vmem:[#allocation9 + $0x8] sm:$0xff]
        %v272 = vld [vmem:[%s251] sm:$0x3]
        %v274 = vlaneseq
        %v275 = vshrl.u32 %v274, 7
        %v276 = vsub.s32 0, %v275
        %v277 = vrot.slane %v272, %v276
        %v278 = vlaneseq
        %v279 = vshrl.u32 %v278, 7
        %v280 = vsub.s32 1, %v279
        %v281 = vrot.slane %v272, %v280
        %v286 = vunpack.c.l.b16 %v270
        %v287 = vunpack.c.h.b16 %v270
        %v288 = vunpack.c.l.b16 %v271
        %v289 = vunpack.c.h.b16 %v271
        %v290 = vpack.c.b16 %v288, %v286
        %v291 = vpack.c.b16 %v289, %v287
        %vm294 = vcmask 130048
        %v296 = vsel %vm294, %v269, 0
        %298 = vmatprep.subr.bf16.mxu0 %v291
        %299 = vmatpush1.bf16.msra.mxu0 %v290
        %300 = vmatprep.subr.bf16.mxu0 0
        %301 = vmatpush1.bf16.msra.mxu0 0
        %302 = vmatprep.subr.bf16.mxu0 0
        %303 = vmatpush1.bf16.msra.mxu0 0
        %304 = vmatprep.subr.bf16.mxu0 0
        %305 = vmatpush1.bf16.msra.mxu0 0
        %306 = vmatprep.subr.bf16.mxu0 0
        %307 = vmatpush1.bf16.msra.mxu0 0
        %308 = vmatprep.subr.bf16.mxu0 0
        %309 = vmatpush1.bf16.msra.mxu0 0
        %310 = vmatprep.subr.bf16.mxu0 0
        %311 = vmatpush1.bf16.msra.mxu0 0
        %312 = vmatprep.subr.bf16.mxu0 0
        %313 = vmatpush1.bf16.msra.mxu0 0
        %314 = vmatprep.subr.bf16.mxu0 0
        %315 = vmatpush1.bf16.msra.mxu0 0
        %316 = vmatprep.subr.bf16.mxu0 0
        %317 = vmatpush1.bf16.msra.mxu0 0
        %318 = vmatprep.subr.bf16.mxu0 0
        %319 = vmatpush1.bf16.msra.mxu0 0
        %320 = vmatprep.subr.bf16.mxu0 0
        %321 = vmatpush1.bf16.msra.mxu0 0
        %322 = vmatprep.subr.bf16.mxu0 0
        %323 = vmatpush1.bf16.msra.mxu0 0
        %324 = vmatprep.subr.bf16.mxu0 0
        %325 = vmatpush1.bf16.msra.mxu0 0
        %326 = vmatprep.subr.bf16.mxu0 0
        %327 = vmatpush1.bf16.msra.mxu0 0
        %328 = vmatprep.subr.bf16.mxu0 0
        %329 = vmatpush1.bf16.msra.mxu0 0
        %330 = vmatprep.mubr.bf16.mxu0 0
        %331 = vmatmul.mubr.bf16.gmra.mrb[0].mxu0 %v296
        %v332 = vpop.f32.mrb[0].mxu0
        %v333 = vadd.f32 %v277, %v332
        %v334 = vpop.f32.mrb[0].mxu0
        %v335 = vadd.f32 %v281, %v334
        %v336 = vpop.f32.mrb[0].mxu0
        %v337 = vpop.f32.mrb[0].mxu0
        %338 = vdwg.mxu0
        %v339 = vmax.f32 %v333, 0.0
        %v340 = vand.u32 2147483647, %v333
        %v341 = vsub.f32 0.0, %v340
        %v342 = vmul.f32 %v341, 1.442695
        %v343 = vpow.pop %v342
        %v344 = vadd.f32 %v343, 1.0
        %v345 = vlog2.pop %v344
        %v346 = vmul.f32 %v345, 0.6931472
        %v347 = vadd.f32 %v339, %v346
        %v348 = vsub.f32 %v333, %v347
        %v349 = vsub.f32 0.0, %v347
        %v350 = vmin.f32 %v335, 0.0
        %v351 = vmul.f32 %v350, 1.442695
        %v352 = vpow.pop %v351
        %vm353 = vcmp.ge.f32.partialorder %v335, 0.0
        %v354 = vadd.f32 %v335, 0.5
        %v355 = vadd.f32 %v352, 1.0
        %v356 = vsel %vm353, %v354, %v355
        %v357 = vlog2.pop %v356
        %v358 = vmul.f32 %v357, 0.6931472
        %v359 = vsub.f32 %v335, %v358
        %v360 = vsel %vm353, %v358, %v359
        %v361 = vadd.f32 %v348, %v360
        %v362 = vld [vmem:[#allocation2] sm:$0xff]
        %v363 = vld [vmem:[#allocation3] sm:$0x1]
        %v365 = vlaneseq
        %v366 = vshrl.u32 %v365, 7
        %v367 = vsub.s32 0, %v366
        %v368 = vrot.slane %v363, %v367
        %vm370 = vcmask 64512
        %v372 = vsel %vm370, %v362, 0
        %374 = vmatprep.subr.mxu0 0.0
        %375 = vmatpush1.msra.mxu0 %v349
        %376 = vmatprep.subr.mxu0 0.0
        %377 = vmatpush1.msra.mxu0 0.0
        %378 = vmatprep.subr.mxu0 0.0
        %379 = vmatpush1.msra.mxu0 0.0
        %380 = vmatprep.subr.mxu0 0.0
        %381 = vmatpush1.msra.mxu0 0.0
        %382 = vmatprep.subr.mxu0 0.0
        %383 = vmatpush1.msra.mxu0 0.0
        %384 = vmatprep.subr.mxu0 0.0
        %385 = vmatpush1.msra.mxu0 0.0
        %386 = vmatprep.subr.mxu0 0.0
        %387 = vmatpush1.msra.mxu0 0.0
        %388 = vmatprep.subr.mxu0 0.0
        %389 = vmatpush1.msra.mxu0 0.0
        %390 = vmatprep.subr.mxu0 0.0
        %391 = vmatpush1.msra.mxu0 0.0
        %392 = vmatprep.subr.mxu0 0.0
        %393 = vmatpush1.msra.mxu0 0.0
        %394 = vmatprep.subr.mxu0 0.0
        %395 = vmatpush1.msra.mxu0 0.0
        %396 = vmatprep.subr.mxu0 0.0
        %397 = vmatpush1.msra.mxu0 0.0
        %398 = vmatprep.subr.mxu0 0.0
        %399 = vmatpush1.msra.mxu0 0.0
        %400 = vmatprep.subr.mxu0 0.0
        %401 = vmatpush1.msra.mxu0 0.0
        %402 = vmatprep.subr.mxu0 0.0
        %403 = vmatpush1.msra.mxu0 0.0
        %404 = vmatprep.subr.mxu0 0.0
        %405 = vmatpush1.msra.mxu0 0.0
        %406 = vmatprep.subr.mxu0 0.0
        %407 = vmatpush1.msra.mxu0 0.0
        %408 = vmatprep.subr.mxu0 0.0
        %409 = vmatpush1.msra.mxu0 0.0
        %410 = vmatprep.subr.mxu0 0.0
        %411 = vmatpush1.msra.mxu0 0.0
        %412 = vmatprep.subr.mxu0 0.0
        %413 = vmatpush1.msra.mxu0 0.0
        %414 = vmatprep.subr.mxu0 0.0
        %415 = vmatpush1.msra.mxu0 0.0
        %416 = vmatprep.subr.mxu0 0.0
        %417 = vmatpush1.msra.mxu0 0.0
        %418 = vmatprep.subr.mxu0 0.0
        %419 = vmatpush1.msra.mxu0 0.0
        %420 = vmatprep.subr.mxu0 0.0
        %421 = vmatpush1.msra.mxu0 0.0
        %422 = vmatprep.subr.mxu0 0.0
        %423 = vmatpush1.msra.mxu0 0.0
        %424 = vmatprep.subr.mxu0 0.0
        %425 = vmatpush1.msra.mxu0 0.0
        %426 = vmatprep.subr.mxu0 0.0
        %427 = vmatpush1.msra.mxu0 0.0
        %428 = vmatprep.subr.mxu0 0.0
        %429 = vmatpush1.msra.mxu0 0.0
        %430 = vmatprep.subr.mxu0 0.0
        %431 = vmatpush1.msra.mxu0 0.0
        %432 = vmatprep.subr.mxu0 0.0
        %433 = vmatpush1.msra.mxu0 0.0
        %434 = vmatprep.subr.mxu0 0.0
        %435 = vmatpush1.msra.mxu0 0.0
        %436 = vmatprep.subr.mxu0 0.0
        %437 = vmatpush1.msra.mxu0 0.0
        %438 = vmatprep.mubr.f32.mxu0 0.0
        %439 = vmatmul.mubr.f32.gmra.mrb[0].mxu0 %v372
        %v440 = vpop.f32.mrb[0].mxu0
        %v441 = vadd.f32 %v368, %v440
        %v442 = vpop.f32.mrb[0].mxu0
        %443 = vdwg.mxu0
        %v444 = vsub.f32 %v361, %v441
        %v445 = vrot.slane %v444, 4
        %v446 = vmax.f32 %v444, %v445
        %v447 = vrot.slane %v446, 2
        %v448 = vmax.f32 %v446, %v447
        %v449 = vrot.slane %v448, 1
        %v450 = vmax.f32 %v448, %v449
        %v451 = vld [vmem:[#allocation4] sm:$0x1]
        %v452 = vmax.f32 %v451, %v450
        %vm453 = vcmp.eq.f32.partialorder %v452, -inf
        %v454 = vsel %vm453, 0.0, %v452
        %v456 = vlaneseq
        %v457 = vshrl.u32 %v456, 7
        %v458 = vsub.s32 0, %v457
        %v459 = vrot.slane %v454, %v458
        %v461 = vsub.f32 %v444, %v459
        %v462 = vmul.f32 %v461, 1.442695
        %v463 = vpow.pop %v462
        %v464 = vld [vmem:[#allocation5] sm:$0x1]
        %v465 = vsub.f32 %v451, %v454
        %v466 = vmul.f32 %v465, 1.442695
        %v467 = vpow.pop %v466
        %v468 = vmul.f32 %v464, %v467
        %v470 = vlaneseq
        %v471 = vshrl.u32 %v470, 7
        %v472 = vsub.s32 0, %v471
        %v473 = vrot.slane %v468, %v472
        %475 = vmatprep.subr.mxu0 0.0
        %476 = vmatpush1.msra.mxu0 %v463
        %477 = vmatprep.subr.mxu0 0.0
        %478 = vmatpush1.msra.mxu0 0.0
        %479 = vmatprep.subr.mxu0 0.0
        %480 = vmatpush1.msra.mxu0 0.0
        %481 = vmatprep.subr.mxu0 0.0
        %482 = vmatpush1.msra.mxu0 0.0
        %483 = vmatprep.subr.mxu0 0.0
        %484 = vmatpush1.msra.mxu0 0.0
        %485 = vmatprep.subr.mxu0 0.0
        %486 = vmatpush1.msra.mxu0 0.0
        %487 = vmatprep.subr.mxu0 0.0
        %488 = vmatpush1.msra.mxu0 0.0
        %489 = vmatprep.subr.mxu0 0.0
        %490 = vmatpush1.msra.mxu0 0.0
        %491 = vmatprep.subr.mxu0 0.0
        %492 = vmatpush1.msra.mxu0 0.0
        %493 = vmatprep.subr.mxu0 0.0
        %494 = vmatpush1.msra.mxu0 0.0
        %495 = vmatprep.subr.mxu0 0.0
        %496 = vmatpush1.msra.mxu0 0.0
        %497 = vmatprep.subr.mxu0 0.0
        %498 = vmatpush1.msra.mxu0 0.0
        %499 = vmatprep.subr.mxu0 0.0
        %500 = vmatpush1.msra.mxu0 0.0
        %501 = vmatprep.subr.mxu0 0.0
        %502 = vmatpush1.msra.mxu0 0.0
        %503 = vmatprep.subr.mxu0 0.0
        %504 = vmatpush1.msra.mxu0 0.0
        %505 = vmatprep.subr.mxu0 0.0
        %506 = vmatpush1.msra.mxu0 0.0
        %507 = vmatprep.subr.mxu0 0.0
        %508 = vmatpush1.msra.mxu0 0.0
        %509 = vmatprep.subr.mxu0 0.0
        %510 = vmatpush1.msra.mxu0 0.0
        %511 = vmatprep.subr.mxu0 0.0
        %512 = vmatpush1.msra.mxu0 0.0
        %513 = vmatprep.subr.mxu0 0.0
        %514 = vmatpush1.msra.mxu0 0.0
        %515 = vmatprep.subr.mxu0 0.0
        %516 = vmatpush1.msra.mxu0 0.0
        %517 = vmatprep.subr.mxu0 0.0
        %518 = vmatpush1.msra.mxu0 0.0
        %519 = vmatprep.subr.mxu0 0.0
        %520 = vmatpush1.msra.mxu0 0.0
        %521 = vmatprep.subr.mxu0 0.0
        %522 = vmatpush1.msra.mxu0 0.0
        %523 = vmatprep.subr.mxu0 0.0
        %524 = vmatpush1.msra.mxu0 0.0
        %525 = vmatprep.subr.mxu0 0.0
        %526 = vmatpush1.msra.mxu0 0.0
        %527 = vmatprep.subr.mxu0 0.0
        %528 = vmatpush1.msra.mxu0 0.0
        %529 = vmatprep.subr.mxu0 0.0
        %530 = vmatpush1.msra.mxu0 0.0
        %531 = vmatprep.subr.mxu0 0.0
        %532 = vmatpush1.msra.mxu0 0.0
        %533 = vmatprep.subr.mxu0 0.0
        %534 = vmatpush1.msra.mxu0 0.0
        %535 = vmatprep.subr.mxu0 0.0
        %536 = vmatpush1.msra.mxu0 0.0
        %537 = vmatprep.subr.mxu0 0.0
        %538 = vmatpush1.msra.mxu0 0.0
        %539 = vmatprep.mubr.f32.mxu0 0.0
        %540 = vmatmul.mubr.f32.gmra.mrb[0].mxu0 %v372
        %v541 = vpop.f32.mrb[0].mxu0
        %v542 = vadd.f32 %v473, %v541
        %v543 = vpop.f32.mrb[0].mxu0
        %544 = vdwg.mxu0
        %v545 = vadd.f32 %v441, %v459
        %v546 = vlog2.pop %v542
        %v547 = vmul.f32 %v546, 0.6931472
        %v548 = vadd.f32 %v545, %v547
        %v549 = vmul.f32 %v548, 1.442695
        %v550 = vpow.pop %v549
        %551 = vst [vmem:[%s247] sm:$0xff] %v550
        %v552 = vld [vmem:[#allocation3] sm:$0x1]
        %v553 = vrot.slane %v349, 4
        %v554 = vadd.f32 %v349, %v553
        %v555 = vrot.slane %v554, 2
        %v556 = vadd.f32 %v554, %v555
        %v557 = vrot.slane %v556, 1
        %v558 = vadd.f32 %v556, %v557
        %v559 = vadd.f32 %v552, %v558
        %560 = vst [vmem:[#allocation3] sm:$0x1] %v559
        %561 = vst [vmem:[#allocation4] sm:$0x1] %v452
        %562 = vst [vmem:[#allocation5 - $0x7] sm:$0x80] %v542
        %s563 = sand.u32 %s132, 1
        %s564 = scalar_lea.sflag [#allocation8], %s563
        %s565 = sand.u32 %s132, 1
        %s566 = smul.addr %s565, 8
        %s567 = scalar_lea.vmem [#allocation11], %s566
        // Predicated region
        $region45: #{tpu_custom_call.1} parent=31 // pred_check
          %p568 = pneg %p142
        $region46: #{tpu_custom_call.1} parent=31 // pred_check_branch
          %570 = sbr.rel (%p568) target = $region48
        $region47: #{tpu_custom_call.1} parent=31 // pred_region
          %s572 = ssub.s32 128, 128
          %573 = vsyncadd %s564, %s572
          %s574 = sadd.s32 %s26, %s28
          %s575 = sadd.s32 %s574, %s27
          %s576 = smul.addr %s575, 128
          %s577 = scalar_lea.hbm %s3, %s576
          %s579 = sshll.u32 %s567, 4
          %s580 = int_to_ptr.vmem [resolvable:$true] %s579
          %582 = dma.vmem_to_hbm [thread:$0]  %s580, 128, %s577, %s564
        $region48: #{tpu_custom_call.1} parent=31 // pred_fallthru
          _
      $region32: #{tpu_custom_call.1} parent=5 // pred_fallthru
        _
      %p583 = scmp.le.s32.totalorder 2, %s16
      // Predicated region
      $region49: #{tpu_custom_call.1} parent=5 // pred_check
        %p584 = pneg %p583
      $region50: #{tpu_custom_call.1} parent=5 // pred_check_branch
        %586 = sbr.rel (%p584) target = $region52
      $region51: #{tpu_custom_call.1} parent=5 // pred_region
        %s587 = ssub.s32 %s16, 2
        // Predicated region
        $region53: #{tpu_custom_call.1} parent=51 // pred_check
          %p588 = pneg %p148
        $region54: #{tpu_custom_call.1} parent=51 // pred_check_branch
          %590 = sbr.rel (%p588) target = $region56
        $region55: #{tpu_custom_call.1} parent=51 // pred_region
          %s591 = sand.u32 %s133, 1
          %s592 = scalar_lea.sflag [#allocation8], %s591
          %s593 = sand.u32 %s133, 1
          %s594 = smul.addr %s593, 8
          %s595 = scalar_lea.vmem [#allocation11], %s594
          %596 = dma.done %s592, 128
        $region56: #{tpu_custom_call.1} parent=51 // pred_fallthru
          _
      $region52: #{tpu_custom_call.1} parent=5 // pred_fallthru
        _
    $region6: #{tpu_custom_call.1} parent=1 // loop_footer
      %s20 = sadd.s32 1, %s16
    $region7: #{tpu_custom_call.1} parent=1 // loop_footer_branch
      %15 = sbr.rel target = $region3
    $region8: #{tpu_custom_call.1} parent=1 // loop_exit
      _
    %597 = vsyncpa [#allocation7], 1
    %s598 = scalar_lea.sflag [#allocation7], 1
    %599 = vsyncpa %s598, 1
    %600 = vsyncpa [#allocation10], 1
    %601 = vsyncpa [#allocation8], 1
    %s602 = scalar_lea.sflag [#allocation8], 1
    %603 = vsyncpa %s602, 1

</llo_original>
